<compile_context>
chip_gen: v7x
topology: tpu7x:2x2x1
jax: 0.10.0
libtpu: 0.0.40
codegen_flags: <defaults>
</compile_context>

<pallas_src>
import functools

import jax
import jax.numpy as jnp
from jax.experimental import pallas as pl
from jax.experimental.pallas import tpu as pltpu


# ---------------------------------------------------------------------------
# generation-aware VMEM budget
# ---------------------------------------------------------------------------

def _round_up(x, m):
    return (x + m - 1) // m * m


def _vmem_limit_bytes():
    cap = 64 * 1024 * 1024                      # conservative default (v7x physical VMEM/TC)
    try:
        info = pltpu.get_tpu_info()
        cap = int(getattr(info, "vmem_capacity_bytes", cap))
    except Exception:
        pass
    # -> ~96 MiB on v5e/v6e (128 MiB physical), ~48 MiB on v7x (64 MiB physical)
    return min(int(cap * 0.75), 100 * 1024 * 1024)


_VMEM_LIMIT = _vmem_limit_bytes()
_BLOCK_BUDGET = _VMEM_LIMIT // 2                # headroom for weights / compiler scratch


def _largest_divisor_leq(n, cap):
    cap = max(1, min(n, cap))
    for d in range(cap, 0, -1):
        if n % d == 0:
            return d
    return 1


# ---------------------------------------------------------------------------
# Fused stride-1 convolution kernel (tap loop + matmul + bias + activation)
# ---------------------------------------------------------------------------

def _conv_rows_kernel(x_ref, w_ref, b_ref, o_ref, *, kh, kw, wo, th, co_blk, activation):
    """One (image, row-tile) grid step of a stride-1 conv.

    x_ref: (th + kh - 1, Wp, Cin)  bf16 input rows (includes the kh-1 halo rows)
    w_ref: (kh * kw, Cin, Cout)    bf16 per-tap weight matrices
    b_ref: (1, Cout)               f32 bias
    o_ref: (th, Wo, Cout)          output rows
    """
    cout = o_ref.shape[-1]

    def row(r, carry):
        # output-channel chunks keep the f32 accumulator small enough to live in vregs
        for co in range(0, cout, co_blk):
            cw = min(co_blk, cout - co)
            acc = jnp.zeros((wo, cw), jnp.float32)
            for i in range(kh):
                for j in range(kw):
                    a = x_ref[r + i, j:j + wo, :]                 # (Wo, Cin) bf16
                    acc = acc + jnp.dot(a, w_ref[i * kw + j, :, co:co + cw],
                                        preferred_element_type=jnp.float32)
            acc = acc + b_ref[0:1, co:co + cw]
            if activation == "relu":
                acc = jnp.maximum(acc, 0.0)
            elif activation == "tanh":
                acc = jnp.tanh(acc)
            o_ref[r, :, co:co + cw] = acc.astype(o_ref.dtype)
        return carry

    jax.lax.fori_loop(0, th, row, 0)


def fused_conv(x_pad, w_taps, bias, kh, kw, *, activation=None,
               out_dtype=jnp.bfloat16, max_rows=None):
    """act(stride-1 conv2d(x_pad, w) + b) with the tap loop fused into one Pallas kernel.

    x_pad:  (N, Hp, Wp, Cin) already padded, NHWC
    w_taps: (kh*kw, Cin, Cout); w_taps[i*kw + j] is the (Cin, Cout) matrix of tap (i, j)
    bias:   (Cout,)
    """
    N, Hp, Wp, Cin = x_pad.shape
    KK, Cin2, Cout = w_taps.shape
    assert KK == kh * kw and Cin2 == Cin
    Ho, Wo = Hp - kh + 1, Wp - kw + 1

    # largest row-tile (divisor of Ho) whose double-buffered in/out blocks fit the budget
    def blk_bytes(th_):
        in_b = (th_ + kh - 1) * _round_up(Wp, 16) * _round_up(Cin, 128) * 2
        out_b = th_ * _round_up(Wo, 16) * _round_up(Cout, 128) * 2
        return 2 * (in_b + out_b)

    cap = Ho if max_rows is None else max(1, min(Ho, max_rows))
    th = 1
    for cand in range(cap, 0, -1):
        if Ho % cand == 0 and blk_bytes(cand) <= _BLOCK_BUDGET:
            th = cand
            break
    nh = Ho // th
    th_in = th + kh - 1

    if nh == 1:
        x_sh = x_pad.reshape(N, 1, Hp, Wp, Cin)
    else:
        # Overlapping row windows (kh-1 halo rows); costs only ~(1 + (kh-1)/th) extra copy.
        # TODO(synk): replace with in-kernel halo DMA (memory_space=pl.ANY + make_async_copy)
        # to remove this pass entirely and enable megacore on single-tile layers.
        x_sh = jnp.stack(
            [jax.lax.slice_in_dim(x_pad, t * th, t * th + th_in, axis=1)
             for t in range(nh)], axis=1)

    co_blk = Cout if Cout <= 128 else 128
    kernel = functools.partial(_conv_rows_kernel, kh=kh, kw=kw, wo=Wo, th=th,
                               co_blk=co_blk, activation=activation)

    out = pl.pallas_call(
        kernel,
        out_shape=jax.ShapeDtypeStruct((N, nh, th, Wo, Cout), out_dtype),
        grid=(N, nh),
        in_specs=[
            pl.BlockSpec((None, None, th_in, Wp, Cin), lambda n, t: (n, t, 0, 0, 0)),
            pl.BlockSpec((KK, Cin, Cout), lambda n, t: (0, 0, 0)),
            pl.BlockSpec((1, Cout), lambda n, t: (0, 0)),
        ],
        out_specs=pl.BlockSpec((None, None, th, Wo, Cout), lambda n, t: (n, t, 0, 0, 0)),
        compiler_params=pltpu.CompilerParams(
            dimension_semantics=("parallel", "parallel"),
            vmem_limit_bytes=_VMEM_LIMIT),
    )(x_sh.astype(jnp.bfloat16),
      w_taps.astype(jnp.bfloat16),
      bias.reshape(1, Cout).astype(jnp.float32))

    return out.reshape(N, Ho, Wo, Cout)


# ---------------------------------------------------------------------------
# Conv layer wrappers (JAX glue only reorganizes data; all MACs run in Pallas)
# ---------------------------------------------------------------------------

def reflect_pad(x, p):
    return jnp.pad(x, ((0, 0), (p, p), (p, p), (0, 0)), mode="reflect")


def conv2d(x, w_oihw, b, *, activation=None, out_dtype=jnp.bfloat16, max_rows=None):
    """stride-1 PyTorch Conv2d on already-padded NHWC input; w: (Cout, Cin, kh, kw)."""
    Cout, Cin, kh, kw = w_oihw.shape
    w_taps = jnp.transpose(w_oihw, (2, 3, 1, 0)).reshape(kh * kw, Cin, Cout)
    return fused_conv(x, w_taps, b, kh, kw, activation=activation,
                      out_dtype=out_dtype, max_rows=max_rows)


def _space_to_depth2(x):
    N, H, W, C = x.shape
    assert H % 2 == 0 and W % 2 == 0
    x = x.reshape(N, H // 2, 2, W // 2, 2, C)
    x = jnp.transpose(x, (0, 1, 3, 2, 4, 5))          # (N, H/2, W/2, p, q, C)
    return x.reshape(N, H // 2, W // 2, 4 * C)


def _depth_to_space2(y):
    N, H, W, C4 = y.shape
    C = C4 // 4
    y = y.reshape(N, H, W, 2, 2, C)                   # (N, H, W, p, q, C)
    y = jnp.transpose(y, (0, 1, 3, 2, 4, 5))          # (N, H, p, W, q, C)
    return y.reshape(N, 2 * H, 2 * W, C)


def conv2d_down(x, w_oihw, b, *, out_dtype=jnp.bfloat16):
    """PyTorch Conv2d(k=3, stride=2, padding=1) == space-to-depth + fused 2x2 conv."""
    Cout, Cin, _, _ = w_oihw.shape
    xp = jnp.pad(x, ((0, 0), (1, 1), (1, 1), (0, 0)))
    xs = _space_to_depth2(xp)                                     # (N, Hp/2, Wp/2, 4*Cin)
    w_ext = jnp.pad(w_oihw, ((0, 0), (0, 0), (0, 1), (0, 1)))     # (Cout, Cin, 4, 4)
    w6 = w_ext.reshape(Cout, Cin, 2, 2, 2, 2)                     # (o, c, a, p, b, q)
    w_taps = jnp.transpose(w6, (2, 4, 3, 5, 1, 0)).reshape(4, 4 * Cin, Cout)
    return fused_conv(xs, w_taps, b, 2, 2, out_dtype=out_dtype)


def conv_transpose2d(x, w_iohw, b, *, out_dtype=jnp.bfloat16):
    """PyTorch ConvTranspose2d(k=3, stride=2, padding=1, output_padding=1).

    Single fused 2x2 stride-1 conv producing the 4 output parities stacked along Cout,
    followed by a depth-to-space interleave.  For output parity (p, q) and input offset
    (a, b) the contributing kernel entry is w[:, :, 1+p-2a, 1+q-2b] (zero if out of range).
    """
    Cin, Cout, kh, kw = w_iohw.shape
    assert (kh, kw) == (3, 3)
    xp = jnp.pad(x, ((0, 0), (0, 1), (0, 1), (0, 0)))             # output_padding row/col
    taps = []
    for a in (0, 1):
        for bb in (0, 1):
            slots = []
            for p in (0, 1):
                for q in (0, 1):
                    i, j = 1 + p - 2 * a, 1 + q - 2 * bb
                    if 0 <= i <= 2 and 0 <= j <= 2:
                        slots.append(w_iohw[:, :, i, j])
                    else:
                        slots.append(jnp.zeros((Cin, Cout), w_iohw.dtype))
            taps.append(jnp.concatenate(slots, axis=1))           # (Cin, 4*Cout)
    w_taps = jnp.stack(taps, axis=0)                              # (4, Cin, 4*Cout)
    b4 = jnp.concatenate([b, b, b, b])
    y = fused_conv(xp, w_taps, b4, 2, 2, out_dtype=out_dtype)     # (N, H, W, 4*Cout)
    return _depth_to_space2(y)


# ---------------------------------------------------------------------------
# InstanceNorm2d (affine=False) -- two HW-tiled Pallas passes, f32 statistics
# ---------------------------------------------------------------------------

def _in_stats_kernel(x_ref, s_ref):
    x = x_ref[...].astype(jnp.float32)            # (hw_blk, C)
    s_ref[0:1, :] = jnp.sum(x, axis=0, keepdims=True)
    s_ref[1:2, :] = jnp.sum(x * x, axis=0, keepdims=True)


def _in_norm_kernel(x_ref, m_ref, s_ref, o_ref, *, relu):
    x = x_ref[...].astype(jnp.float32)            # (hw_blk, C)
    y = (x - m_ref[...]) * s_ref[...]
    if relu:
        y = jnp.maximum(y, 0.0)
    o_ref[...] = y.astype(o_ref.dtype)


def _in_norm_add_kernel(x_ref, m_ref, s_ref, r_ref, o_ref):
    x = x_ref[...].astype(jnp.float32)
    y = r_ref[...].astype(jnp.float32) + (x - m_ref[...]) * s_ref[...]
    o_ref[...] = y.astype(o_ref.dtype)


def instance_norm(x, *, relu=False, residual=None, eps=1e-5):
    """InstanceNorm2d(affine=False) [+ ReLU | + residual]; x (and residual) NHWC."""
    N, H, W, C = x.shape
    HW = H * W
    hw_blk = _largest_divisor_leq(HW, 4096)
    if hw_blk != HW and hw_blk % 8 != 0:
        hw_blk = HW
    n_hw = HW // hw_blk
    x2 = x.reshape(N, HW, C)
    cparams = pltpu.CompilerParams(dimension_semantics=("parallel", "parallel"),
                                   vmem_limit_bytes=_VMEM_LIMIT)

    # TODO(synk): fuse this statistics pass into the producing conv's epilogue to save one
    # HBM read of the activation; also pack C=64 layers into a lane-dense (HW/2, 128) view.
    part = pl.pallas_call(
        _in_stats_kernel,
        out_shape=jax.ShapeDtypeStruct((N, n_hw, 2, C), jnp.float32),
        grid=(N, n_hw),
        in_specs=[pl.BlockSpec((None, hw_blk, C), lambda n, h: (n, h, 0))],
        out_specs=pl.BlockSpec((None, None, 2, C), lambda n, h: (n, h, 0, 0)),
        compiler_params=cparams,
    )(x2)

    sums = jnp.sum(part, axis=1)                  # (N, 2, C) f32
    mean = sums[:, 0] / HW
    var = jnp.maximum(sums[:, 1] / HW - mean * mean, 0.0)   # biased var (PyTorch IN)
    scale = jax.lax.rsqrt(var + eps)
    mean3 = mean.reshape(N, 1, C)
    scale3 = scale.reshape(N, 1, C)

    x_spec = pl.BlockSpec((None, hw_blk, C), lambda n, h: (n, h, 0))
    v_spec = pl.BlockSpec((None, 1, C), lambda n, h: (n, 0, 0))

    if residual is None:
        out = pl.pallas_call(
            functools.partial(_in_norm_kernel, relu=relu),
            out_shape=jax.ShapeDtypeStruct((N, HW, C), x.dtype),
            grid=(N, n_hw),
            in_specs=[x_spec, v_spec, v_spec],
            out_specs=x_spec,
            compiler_params=cparams,
        )(x2, mean3, scale3)
    else:
        out = pl.pallas_call(
            _in_norm_add_kernel,
            out_shape=jax.ShapeDtypeStruct((N, HW, C), x.dtype),
            grid=(N, n_hw),
            in_specs=[x_spec, v_spec, v_spec, x_spec],
            out_specs=x_spec,
            compiler_params=cparams,
        )(x2, mean3, scale3, residual.reshape(N, HW, C))
    return out.reshape(N, H, W, C)


# ---------------------------------------------------------------------------
# Generator parameters + forward
# ---------------------------------------------------------------------------

def _init_conv(key, cout, cin, k, scale=0.05):
    k1, k2 = jax.random.split(key)
    w = scale * jax.random.normal(k1, (cout, cin, k, k), jnp.float32)
    b = scale * jax.random.normal(k2, (cout,), jnp.float32)
    return w, b


def _init_convT(key, cin, cout, k, scale=0.05):
    k1, k2 = jax.random.split(key)
    w = scale * jax.random.normal(k1, (cin, cout, k, k), jnp.float32)
    b = scale * jax.random.normal(k2, (cout,), jnp.float32)
    return w, b


def init_generator_params(key, inch, outch, nblocks=9):
    n_keys = 1 + 2 + 2 * nblocks + 2 + 1
    it = iter(jax.random.split(key, n_keys))
    params = {"head": _init_conv(next(it), 64, inch, 7)}
    feat = 64
    down = []
    for _ in range(2):
        down.append(_init_conv(next(it), feat * 2, feat, 3))
        feat *= 2
    params["down"] = down
    params["res"] = [(_init_conv(next(it), feat, feat, 3),
                      _init_conv(next(it), feat, feat, 3)) for _ in range(nblocks)]
    up = []
    for _ in range(2):
        up.append(_init_convT(next(it), feat, feat // 2, 3))
        feat //= 2
    params["up"] = up
    params["tail"] = _init_conv(next(it), outch, 64, 7)
    return params


def generator_forward(params, x_nchw):
    # NCHW -> NHWC; inter-layer activations in bf16 (statistics / accumulation in f32).
    x = jnp.transpose(x_nchw, (0, 2, 3, 1)).astype(jnp.bfloat16)

    # head: ReflectionPad2d(3) -> Conv 7x7 -> IN -> ReLU
    w, b = params["head"]
    h = conv2d(reflect_pad(x, 3), w, b)
    h = instance_norm(h, relu=True)

    # 2x downsample: Conv 3x3 s2 p1 -> IN -> ReLU
    for (w, b) in params["down"]:
        h = conv2d_down(h, w, b)
        h = instance_norm(h, relu=True)

    # residual blocks
    for ((w1, b1), (w2, b2)) in params["res"]:
        r = h
        t = conv2d(reflect_pad(h, 1), w1, b1)
        t = instance_norm(t, relu=True)
        t = conv2d(reflect_pad(t, 1), w2, b2)
        h = instance_norm(t, residual=r)

    # 2x upsample: ConvTranspose 3x3 s2 p1 op1 -> IN -> ReLU
    for (w, b) in params["up"]:
        h = conv_transpose2d(h, w, b)
        h = instance_norm(h, relu=True)

    # tail: ReflectionPad2d(3) -> Conv 7x7 -> Tanh (fused into the conv epilogue)
    w, b = params["tail"]
    h = conv2d(reflect_pad(h, 3), w, b, activation="tanh", out_dtype=jnp.float32)
    return jnp.transpose(h, (0, 3, 1, 2))          # NHWC -> NCHW


# ---------------------------------------------------------------------------
# Pure-JAX f32 reference (for tolerance-based validation)
# ---------------------------------------------------------------------------

def _ref_conv(x, w, b, stride=1, padding=0):
    out = jax.lax.conv_general_dilated(
        x, jnp.transpose(w, (2, 3, 1, 0)),
        window_strides=(stride, stride),
        padding=[(padding, padding), (padding, padding)],
        dimension_numbers=("NHWC", "HWIO", "NHWC"))
    return out + b.reshape(1, 1, 1, -1)


def _ref_conv_transpose(x, w, b):
    wf = jnp.transpose(w[:, :, ::-1, ::-1], (2, 3, 0, 1))
    out = jax.lax.conv_general_dilated(
        x, wf, window_strides=(1, 1), padding=[(1, 2), (1, 2)],
        lhs_dilation=(2, 2), dimension_numbers=("NHWC", "HWIO", "NHWC"))
    return out + b.reshape(1, 1, 1, -1)


def _ref_in(x, eps=1e-5):
    mean = x.mean(axis=(1, 2), keepdims=True)
    var = x.var(axis=(1, 2), keepdims=True)
    return (x - mean) * jax.lax.rsqrt(var + eps)


def reference_forward(params, x_nchw):
    x = jnp.transpose(x_nchw, (0, 2, 3, 1)).astype(jnp.float32)
    rp = lambda a, p: jnp.pad(a, ((0, 0), (p, p), (p, p), (0, 0)), mode="reflect")
    w, b = params["head"]
    h = jax.nn.relu(_ref_in(_ref_conv(rp(x, 3), w, b)))
    for (w, b) in params["down"]:
        h = jax.nn.relu(_ref_in(_ref_conv(h, w, b, stride=2, padding=1)))
    for ((w1, b1), (w2, b2)) in params["res"]:
        r = h
        t = jax.nn.relu(_ref_in(_ref_conv(rp(h, 1), w1, b1)))
        t = _ref_in(_ref_conv(rp(t, 1), w2, b2))
        h = r + t
    for (w, b) in params["up"]:
        h = jax.nn.relu(_ref_in(_ref_conv_transpose(h, w, b)))
    w, b = params["tail"]
    h = jnp.tanh(_ref_conv(rp(h, 3), w, b))
    return jnp.transpose(h, (0, 3, 1, 2))


if __name__ == "__main__":
    key = jax.random.PRNGKey(0)
    kp, kx, kc1, kc2 = jax.random.split(key, 4)

    # --- standalone check of the fused conv kernel (forces the shingled nh>1 path) ---
    xt = jax.random.normal(kc1, (1, 12, 12, 8), jnp.float32)
    wt = 0.1 * jax.random.normal(kc2, (16, 8, 3, 3), jnp.float32)
    bt = 0.1 * jnp.ones((16,), jnp.float32)
    xt_pad = jnp.pad(xt, ((0, 0), (1, 1), (1, 1), (0, 0)))
    got = conv2d(xt_pad, wt, bt, max_rows=4)                 # 3 row tiles of 4 rows
    want = _ref_conv(xt, wt, bt, stride=1, padding=1)
    conv_err = float(jnp.max(jnp.abs(got.astype(jnp.float32) - want)))
    assert conv_err < 5e-2, f"fused conv mismatch: {conv_err}"

    # --- full generator, small test config ---
    inch, outch, nblocks = 3, 3, 3
    batch, spatial = 2, 16
    params = init_generator_params(kp, inch, outch, nblocks=nblocks)
    x = jax.random.normal(kx, (batch, inch, spatial, spatial), jnp.float32)

    fwd = jax.jit(generator_forward)
    y = fwd(params, x)
    jax.block_until_ready(y)

    assert y.shape == (batch, outch, spatial, spatial), y.shape
    assert bool(jnp.all(jnp.isfinite(y))), "non-finite output"

    y_ref = jax.jit(reference_forward)(params, x)
    diff = jnp.abs(y - y_ref)
    max_diff, mean_diff = float(jnp.max(diff)), float(jnp.mean(diff))
    assert max_diff < 0.30 and mean_diff < 0.06, \
        f"mismatch vs f32 reference: max={max_diff} mean={mean_diff}"

    print("KERNEL_OK")
</pallas_src>

<mosaic_0001>
module attributes {stable_mosaic.version = 11 : i64} {
  func.func @_conv_rows_kernel(%arg0: i32, %arg1: i32, %arg2: memref<1x1x6x14x8xbf16, #tpu.memory_space<vmem>>, %arg3: memref<9x8x16xbf16, #tpu.memory_space<vmem>>, %arg4: memref<1x16xf32, #tpu.memory_space<vmem>>, %arg5: memref<1x1x4x12x16xbf16, #tpu.memory_space<vmem>>) attributes {dimension_semantics = [#tpu.dimension_semantics<parallel>, #tpu.dimension_semantics<parallel>], iteration_bounds = array<i64: 1, 3>, scalar_prefetch = 0 : i64, scratch_operands = 0 : i64, tpu.core_type = #tpu.core_type<tc>, window_params = [{transform_indices = @transform_0, window_bounds = array<i64: 1, 1, 6, 14, 8>}, {pipeline_mode = #tpu.pipeline_mode<synchronous>, transform_indices = @transform_1, window_bounds = array<i64: 9, 8, 16>}, {pipeline_mode = #tpu.pipeline_mode<synchronous>, transform_indices = @transform_2, window_bounds = array<i64: 1, 16>}, {transform_indices = @transform_3, window_bounds = array<i64: 1, 1, 4, 12, 16>}]} {
    %c0_i32 = arith.constant 0 : i32
    %c4_i32 = arith.constant 4 : i32
    %0 = arith.addi %c0_i32, %c4_i32 : i32
    %c1_i32 = arith.constant 1 : i32
    scf.for %arg6 = %c0_i32 to %0 step %c1_i32  : i32 {
      %cst = arith.constant 0.000000e+00 : f32
      %1 = vector.broadcast %cst : f32 to vector<12x16xf32>
      %c0_i32_1 = arith.constant 0 : i32
      %2 = arith.addi %arg6, %c0_i32_1 : i32
      %c0 = arith.constant 0 : index
      %c0_2 = arith.constant 0 : index
      %3 = arith.index_cast %2 : i32 to index
      %c0_3 = arith.constant 0 : index
      %c0_4 = arith.constant 0 : index
      %4 = vector.load %arg2[%c0, %c0_2, %3, %c0_3, %c0_4] : memref<1x1x6x14x8xbf16, #tpu.memory_space<vmem>>, vector<1x1x1x12x8xbf16>
      %5 = vector.shape_cast %4 : vector<1x1x1x12x8xbf16> to vector<12x8xbf16>
      %c0_5 = arith.constant 0 : index
      %c0_6 = arith.constant 0 : index
      %c0_7 = arith.constant 0 : index
      %6 = vector.load %arg3[%c0_5, %c0_6, %c0_7] : memref<9x8x16xbf16, #tpu.memory_space<vmem>>, vector<1x8x16xbf16>
      %7 = vector.shape_cast %6 : vector<1x8x16xbf16> to vector<8x16xbf16>
      %cst_8 = arith.constant dense<0.000000e+00> : vector<12x16xf32>
      %8 = tpu.matmul %5, %7, %cst_8 {dimension_numbers = #tpu.dot_dimension_numbers<[1], [0], [0], [1], [0, 0, 1, 1], [], []>} : vector<12x8xbf16>, vector<8x16xbf16>, vector<12x16xf32> -> vector<12x16xf32>
      %9 = arith.addf %1, %8 : vector<12x16xf32>
      %c0_i32_9 = arith.constant 0 : i32
      %10 = arith.addi %arg6, %c0_i32_9 : i32
      %c0_10 = arith.constant 0 : index
      %c0_11 = arith.constant 0 : index
      %11 = arith.index_cast %10 : i32 to index
      %c1 = arith.constant 1 : index
      %c0_12 = arith.constant 0 : index
      %12 = vector.load %arg2[%c0_10, %c0_11, %11, %c1, %c0_12] : memref<1x1x6x14x8xbf16, #tpu.memory_space<vmem>>, vector<1x1x1x12x8xbf16>
      %13 = vector.shape_cast %12 : vector<1x1x1x12x8xbf16> to vector<12x8xbf16>
      %c1_13 = arith.constant 1 : index
      %c0_14 = arith.constant 0 : index
      %c0_15 = arith.constant 0 : index
      %14 = vector.load %arg3[%c1_13, %c0_14, %c0_15] : memref<9x8x16xbf16, #tpu.memory_space<vmem>>, vector<1x8x16xbf16>
      %15 = vector.shape_cast %14 : vector<1x8x16xbf16> to vector<8x16xbf16>
      %cst_16 = arith.constant dense<0.000000e+00> : vector<12x16xf32>
      %16 = tpu.matmul %13, %15, %cst_16 {dimension_numbers = #tpu.dot_dimension_numbers<[1], [0], [0], [1], [0, 0, 1, 1], [], []>} : vector<12x8xbf16>, vector<8x16xbf16>, vector<12x16xf32> -> vector<12x16xf32>
      %17 = arith.addf %9, %16 : vector<12x16xf32>
      %c0_i32_17 = arith.constant 0 : i32
      %18 = arith.addi %arg6, %c0_i32_17 : i32
      %c0_18 = arith.constant 0 : index
      %c0_19 = arith.constant 0 : index
      %19 = arith.index_cast %18 : i32 to index
      %c2 = arith.constant 2 : index
      %c0_20 = arith.constant 0 : index
      %20 = vector.load %arg2[%c0_18, %c0_19, %19, %c2, %c0_20] : memref<1x1x6x14x8xbf16, #tpu.memory_space<vmem>>, vector<1x1x1x12x8xbf16>
      %21 = vector.shape_cast %20 : vector<1x1x1x12x8xbf16> to vector<12x8xbf16>
      %c2_21 = arith.constant 2 : index
      %c0_22 = arith.constant 0 : index
      %c0_23 = arith.constant 0 : index
      %22 = vector.load %arg3[%c2_21, %c0_22, %c0_23] : memref<9x8x16xbf16, #tpu.memory_space<vmem>>, vector<1x8x16xbf16>
      %23 = vector.shape_cast %22 : vector<1x8x16xbf16> to vector<8x16xbf16>
      %cst_24 = arith.constant dense<0.000000e+00> : vector<12x16xf32>
      %24 = tpu.matmul %21, %23, %cst_24 {dimension_numbers = #tpu.dot_dimension_numbers<[1], [0], [0], [1], [0, 0, 1, 1], [], []>} : vector<12x8xbf16>, vector<8x16xbf16>, vector<12x16xf32> -> vector<12x16xf32>
      %25 = arith.addf %17, %24 : vector<12x16xf32>
      %c1_i32_25 = arith.constant 1 : i32
      %26 = arith.addi %arg6, %c1_i32_25 : i32
      %c0_26 = arith.constant 0 : index
      %c0_27 = arith.constant 0 : index
      %27 = arith.index_cast %26 : i32 to index
      %c0_28 = arith.constant 0 : index
      %c0_29 = arith.constant 0 : index
      %28 = vector.load %arg2[%c0_26, %c0_27, %27, %c0_28, %c0_29] : memref<1x1x6x14x8xbf16, #tpu.memory_space<vmem>>, vector<1x1x1x12x8xbf16>
      %29 = vector.shape_cast %28 : vector<1x1x1x12x8xbf16> to vector<12x8xbf16>
      %c3 = arith.constant 3 : index
      %c0_30 = arith.constant 0 : index
      %c0_31 = arith.constant 0 : index
      %30 = vector.load %arg3[%c3, %c0_30, %c0_31] : memref<9x8x16xbf16, #tpu.memory_space<vmem>>, vector<1x8x16xbf16>
      %31 = vector.shape_cast %30 : vector<1x8x16xbf16> to vector<8x16xbf16>
      %cst_32 = arith.constant dense<0.000000e+00> : vector<12x16xf32>
      %32 = tpu.matmul %29, %31, %cst_32 {dimension_numbers = #tpu.dot_dimension_numbers<[1], [0], [0], [1], [0, 0, 1, 1], [], []>} : vector<12x8xbf16>, vector<8x16xbf16>, vector<12x16xf32> -> vector<12x16xf32>
      %33 = arith.addf %25, %32 : vector<12x16xf32>
      %c1_i32_33 = arith.constant 1 : i32
      %34 = arith.addi %arg6, %c1_i32_33 : i32
      %c0_34 = arith.constant 0 : index
      %c0_35 = arith.constant 0 : index
      %35 = arith.index_cast %34 : i32 to index
      %c1_36 = arith.constant 1 : index
      %c0_37 = arith.constant 0 : index
      %36 = vector.load %arg2[%c0_34, %c0_35, %35, %c1_36, %c0_37] : memref<1x1x6x14x8xbf16, #tpu.memory_space<vmem>>, vector<1x1x1x12x8xbf16>
      %37 = vector.shape_cast %36 : vector<1x1x1x12x8xbf16> to vector<12x8xbf16>
      %c4 = arith.constant 4 : index
      %c0_38 = arith.constant 0 : index
      %c0_39 = arith.constant 0 : index
      %38 = vector.load %arg3[%c4, %c0_38, %c0_39] : memref<9x8x16xbf16, #tpu.memory_space<vmem>>, vector<1x8x16xbf16>
      %39 = vector.shape_cast %38 : vector<1x8x16xbf16> to vector<8x16xbf16>
      %cst_40 = arith.constant dense<0.000000e+00> : vector<12x16xf32>
      %40 = tpu.matmul %37, %39, %cst_40 {dimension_numbers = #tpu.dot_dimension_numbers<[1], [0], [0], [1], [0, 0, 1, 1], [], []>} : vector<12x8xbf16>, vector<8x16xbf16>, vector<12x16xf32> -> vector<12x16xf32>
      %41 = arith.addf %33, %40 : vector<12x16xf32>
      %c1_i32_41 = arith.constant 1 : i32
      %42 = arith.addi %arg6, %c1_i32_41 : i32
      %c0_42 = arith.constant 0 : index
      %c0_43 = arith.constant 0 : index
      %43 = arith.index_cast %42 : i32 to index
      %c2_44 = arith.constant 2 : index
      %c0_45 = arith.constant 0 : index
      %44 = vector.load %arg2[%c0_42, %c0_43, %43, %c2_44, %c0_45] : memref<1x1x6x14x8xbf16, #tpu.memory_space<vmem>>, vector<1x1x1x12x8xbf16>
      %45 = vector.shape_cast %44 : vector<1x1x1x12x8xbf16> to vector<12x8xbf16>
      %c5 = arith.constant 5 : index
      %c0_46 = arith.constant 0 : index
      %c0_47 = arith.constant 0 : index
      %46 = vector.load %arg3[%c5, %c0_46, %c0_47] : memref<9x8x16xbf16, #tpu.memory_space<vmem>>, vector<1x8x16xbf16>
      %47 = vector.shape_cast %46 : vector<1x8x16xbf16> to vector<8x16xbf16>
      %cst_48 = arith.constant dense<0.000000e+00> : vector<12x16xf32>
      %48 = tpu.matmul %45, %47, %cst_48 {dimension_numbers = #tpu.dot_dimension_numbers<[1], [0], [0], [1], [0, 0, 1, 1], [], []>} : vector<12x8xbf16>, vector<8x16xbf16>, vector<12x16xf32> -> vector<12x16xf32>
      %49 = arith.addf %41, %48 : vector<12x16xf32>
      %c2_i32 = arith.constant 2 : i32
      %50 = arith.addi %arg6, %c2_i32 : i32
      %c0_49 = arith.constant 0 : index
      %c0_50 = arith.constant 0 : index
      %51 = arith.index_cast %50 : i32 to index
      %c0_51 = arith.constant 0 : index
      %c0_52 = arith.constant 0 : index
      %52 = vector.load %arg2[%c0_49, %c0_50, %51, %c0_51, %c0_52] : memref<1x1x6x14x8xbf16, #tpu.memory_space<vmem>>, vector<1x1x1x12x8xbf16>
      %53 = vector.shape_cast %52 : vector<1x1x1x12x8xbf16> to vector<12x8xbf16>
      %c6 = arith.constant 6 : index
      %c0_53 = arith.constant 0 : index
      %c0_54 = arith.constant 0 : index
      %54 = vector.load %arg3[%c6, %c0_53, %c0_54] : memref<9x8x16xbf16, #tpu.memory_space<vmem>>, vector<1x8x16xbf16>
      %55 = vector.shape_cast %54 : vector<1x8x16xbf16> to vector<8x16xbf16>
      %cst_55 = arith.constant dense<0.000000e+00> : vector<12x16xf32>
      %56 = tpu.matmul %53, %55, %cst_55 {dimension_numbers = #tpu.dot_dimension_numbers<[1], [0], [0], [1], [0, 0, 1, 1], [], []>} : vector<12x8xbf16>, vector<8x16xbf16>, vector<12x16xf32> -> vector<12x16xf32>
      %57 = arith.addf %49, %56 : vector<12x16xf32>
      %c2_i32_56 = arith.constant 2 : i32
      %58 = arith.addi %arg6, %c2_i32_56 : i32
      %c0_57 = arith.constant 0 : index
      %c0_58 = arith.constant 0 : index
      %59 = arith.index_cast %58 : i32 to index
      %c1_59 = arith.constant 1 : index
      %c0_60 = arith.constant 0 : index
      %60 = vector.load %arg2[%c0_57, %c0_58, %59, %c1_59, %c0_60] : memref<1x1x6x14x8xbf16, #tpu.memory_space<vmem>>, vector<1x1x1x12x8xbf16>
      %61 = vector.shape_cast %60 : vector<1x1x1x12x8xbf16> to vector<12x8xbf16>
      %c7 = arith.constant 7 : index
      %c0_61 = arith.constant 0 : index
      %c0_62 = arith.constant 0 : index
      %62 = vector.load %arg3[%c7, %c0_61, %c0_62] : memref<9x8x16xbf16, #tpu.memory_space<vmem>>, vector<1x8x16xbf16>
      %63 = vector.shape_cast %62 : vector<1x8x16xbf16> to vector<8x16xbf16>
      %cst_63 = arith.constant dense<0.000000e+00> : vector<12x16xf32>
      %64 = tpu.matmul %61, %63, %cst_63 {dimension_numbers = #tpu.dot_dimension_numbers<[1], [0], [0], [1], [0, 0, 1, 1], [], []>} : vector<12x8xbf16>, vector<8x16xbf16>, vector<12x16xf32> -> vector<12x16xf32>
      %65 = arith.addf %57, %64 : vector<12x16xf32>
      %c2_i32_64 = arith.constant 2 : i32
      %66 = arith.addi %arg6, %c2_i32_64 : i32
      %c0_65 = arith.constant 0 : index
      %c0_66 = arith.constant 0 : index
      %67 = arith.index_cast %66 : i32 to index
      %c2_67 = arith.constant 2 : index
      %c0_68 = arith.constant 0 : index
      %68 = vector.load %arg2[%c0_65, %c0_66, %67, %c2_67, %c0_68] : memref<1x1x6x14x8xbf16, #tpu.memory_space<vmem>>, vector<1x1x1x12x8xbf16>
      %69 = vector.shape_cast %68 : vector<1x1x1x12x8xbf16> to vector<12x8xbf16>
      %c8 = arith.constant 8 : index
      %c0_69 = arith.constant 0 : index
      %c0_70 = arith.constant 0 : index
      %70 = vector.load %arg3[%c8, %c0_69, %c0_70] : memref<9x8x16xbf16, #tpu.memory_space<vmem>>, vector<1x8x16xbf16>
      %71 = vector.shape_cast %70 : vector<1x8x16xbf16> to vector<8x16xbf16>
      %cst_71 = arith.constant dense<0.000000e+00> : vector<12x16xf32>
      %72 = tpu.matmul %69, %71, %cst_71 {dimension_numbers = #tpu.dot_dimension_numbers<[1], [0], [0], [1], [0, 0, 1, 1], [], []>} : vector<12x8xbf16>, vector<8x16xbf16>, vector<12x16xf32> -> vector<12x16xf32>
      %73 = arith.addf %65, %72 : vector<12x16xf32>
      %c0_72 = arith.constant 0 : index
      %c0_73 = arith.constant 0 : index
      %74 = vector.load %arg4[%c0_72, %c0_73] : memref<1x16xf32, #tpu.memory_space<vmem>>, vector<1x16xf32>
      %75 = vector.broadcast %74 : vector<1x16xf32> to vector<12x16xf32>
      %76 = arith.addf %73, %75 : vector<12x16xf32>
      %77 = arith.truncf %76 : vector<12x16xf32> to vector<12x16xbf16>
      %c0_74 = arith.constant 0 : index
      %c0_75 = arith.constant 0 : index
      %78 = arith.index_cast %arg6 : i32 to index
      %c0_76 = arith.constant 0 : index
      %c0_77 = arith.constant 0 : index
      %79 = vector.load %arg5[%c0_74, %c0_75, %78, %c0_76, %c0_77] : memref<1x1x4x12x16xbf16, #tpu.memory_space<vmem>>, vector<1x1x1x12x16xbf16>
      %80 = vector.shape_cast %79 : vector<1x1x1x12x16xbf16> to vector<12x16xbf16>
      %81 = vector.shape_cast %77 : vector<12x16xbf16> to vector<1x1x1x12x16xbf16>
      tpu.vector_store %arg5[%c0_74, %c0_75, %78, %c0_76, %c0_77], %81 {strides = array<i32>} : memref<1x1x4x12x16xbf16, #tpu.memory_space<vmem>>, vector<1x1x1x12x16xbf16>,
    }
    %c4_i32_0 = arith.constant 4 : i32
    return
  }
  func.func @transform_0(%arg0: i32, %arg1: i32) -> (i32, i32, i32, i32, i32) {
    %c0_i32 = arith.constant 0 : i32
    %c0_i32_0 = arith.constant 0 : i32
    %c0_i32_1 = arith.constant 0 : i32
    %c0_i32_2 = arith.constant 0 : i32
    return %arg0, %arg1, %c0_i32, %c0_i32_0, %c0_i32_1 : i32, i32, i32, i32, i32
  }
  func.func @transform_1(%arg0: i32, %arg1: i32) -> (i32, i32, i32) {
    %c0_i32 = arith.constant 0 : i32
    %c0_i32_0 = arith.constant 0 : i32
    %c0_i32_1 = arith.constant 0 : i32
    %c0_i32_2 = arith.constant 0 : i32
    return %c0_i32, %c0_i32_0, %c0_i32_1 : i32, i32, i32
  }
  func.func @transform_2(%arg0: i32, %arg1: i32) -> (i32, i32) {
    %c0_i32 = arith.constant 0 : i32
    %c0_i32_0 = arith.constant 0 : i32
    %c0_i32_1 = arith.constant 0 : i32
    return %c0_i32, %c0_i32_0 : i32, i32
  }
  func.func @transform_3(%arg0: i32, %arg1: i32) -> (i32, i32, i32, i32, i32) {
    %c0_i32 = arith.constant 0 : i32
    %c0_i32_0 = arith.constant 0 : i32
    %c0_i32_1 = arith.constant 0 : i32
    %c0_i32_2 = arith.constant 0 : i32
    return %arg0, %arg1, %c0_i32, %c0_i32_0, %c0_i32_1 : i32, i32, i32, i32, i32
  }
}

</mosaic_0001>

<llo_original>
// kernel: tpu_custom_call.1
$region0: #{tpu_custom_call.1}
  #allocation0 [shape = 'u32[]', space=smem, size = 0x4, offset = 0x4, fixed_abs, tag = 'smem constant byte address 0x4 - core index']
  #allocation1 [shape = 'u32[144,128]{1,0:T(1,128)}', space=vmem, size = 0x12000, scoped, tag = 'internal scratch']
  %s0 = inlined_call_operand.vmem [shape: bf16[1,3,6,14,8], index: 0, kind: input, shape index: {}]
  %s1 = inlined_call_operand.vmem [shape: bf16[9,8,16], index: 1, kind: input, shape index: {}]
  %s2 = inlined_call_operand.vmem [shape: f32[1,16], index: 2, kind: input, shape index: {}]
  %s3 = inlined_call_operand.vmem [shape: bf16[1,3,4,12,16], index: 3, kind: output, shape index: {}]
  %s4 = sld [smem:[#allocation0]]
  $region52: #{tpu_custom_call.1} parent=0
    _
  %s6 = ssub.s32 1, %s4
  %s7 = scalar_select 0, %s6, %s4
  loop: start=0, step=1, limit=5
  $region2: #{tpu_custom_call.1} parent=0 // loop_pre_header
    _
  $region3: #{tpu_custom_call.1} parent=0 // loop_header
    %s9 = sphi 0, %s13
    %p10 = scmp.ge.s32.totalorder %s9, 5
    %s16 = sphi 0, %s28
    %s17 = sphi 0, %s24
    %s18 = sphi 0, %s16
    %s19 = sphi 0, %s17
    %s20 = sphi 0, %s18
    %s21 = sphi 0, %s19
    %s33 = sphi 0, %s35
    %s36 = sphi 0, %s33
    %s37 = sphi 0, %s36
    %s53 = sphi 0, %s37
    %s57 = sphi 0, %s57
    %s59 = sphi 0, %s57
    %s60 = sphi 0, %s59
    %s74 = sphi 0, %s60
    %s78 = sphi 0, %s78
    %s80 = sphi 0, %s78
    %s81 = sphi 0, %s80
    %s95 = sphi 0, %s81
    %s103 = sphi 0, %s105
    %s106 = sphi 0, %s103
    %s107 = sphi 0, %s106
    %s123 = sphi 0, %s107
  $region4: #{tpu_custom_call.1} parent=0 // loop_header_branch
    %12 = sbr.rel (%p10) target = $region8
  $region5: #{tpu_custom_call.1} parent=0 // loop_body
    %s14 = ssub.s32 %s9, 1
    %s15 = ssub.s32 %s9, 2
    %s22 = sadd.s32 1, %s17
    %p23 = scmp.ge.s32.totalorder %s22, 3
    %s24 = scalar_select %p23, 0, %s22
    %s25 = sadd.s32 1, %s16
    %s26 = scalar_select %p23, %s25, %s16
    %p27 = scmp.ge.s32.totalorder %s26, 1
    %s28 = scalar_select %p27, 0, %s26
    %s29 = ssub.s32 %s16, %s28
    %s30 = ssub.s32 %s17, %s24
    %s31 = sor.u32 %s29, %s30
    %p32 = scmp.eq.s32.totalorder %s31, 0
    %s34 = sadd.s32 %s33, 1
    %s35 = scalar_select %p32, %s33, %s34
    %p38 = pneg %p32
    %p39 = scmp.eq.s32.totalorder %s9, 2
    %p40 = por %p38, %p39
    %p41 = scmp.ne.s32.totalorder %s33, %s36
    %p42 = scmp.eq.s32.totalorder %s9, 0
    %p43 = por %p41, %p42
    %p44 = scmp.ne.s32.totalorder %s33, %s36
    %p45 = scmp.eq.s32.totalorder %s14, 2
    %p46 = por %p44, %p45
    %p47 = scmp.ne.s32.totalorder %s36, %s37
    %p48 = scmp.eq.s32.totalorder %s14, 0
    %p49 = por %p47, %p48
    %p50 = scmp.ne.s32.totalorder %s36, %s37
    %p51 = scmp.eq.s32.totalorder %s15, 2
    %p52 = por %p50, %p51
    %p54 = scmp.ne.s32.totalorder %s37, %s53
    %p55 = scmp.eq.s32.totalorder %s15, 0
    %p56 = por %p54, %p55
    %s58 = sadd.s32 %s57, 1
    %p61 = scmp.eq.s32.totalorder %s9, 2
    %p62 = scmp.ne.s32.totalorder %s57, %s59
    %p63 = scmp.eq.s32.totalorder %s9, 0
    %p64 = por %p62, %p63
    %p65 = scmp.ne.s32.totalorder %s57, %s59
    %p66 = scmp.eq.s32.totalorder %s14, 2
    %p67 = por %p65, %p66
    %p68 = scmp.ne.s32.totalorder %s59, %s60
    %p69 = scmp.eq.s32.totalorder %s14, 0
    %p70 = por %p68, %p69
    %p71 = scmp.ne.s32.totalorder %s59, %s60
    %p72 = scmp.eq.s32.totalorder %s15, 2
    %p73 = por %p71, %p72
    %p75 = scmp.ne.s32.totalorder %s60, %s74
    %p76 = scmp.eq.s32.totalorder %s15, 0
    %p77 = por %p75, %p76
    %s79 = sadd.s32 %s78, 1
    %p82 = scmp.eq.s32.totalorder %s9, 2
    %p83 = scmp.ne.s32.totalorder %s78, %s80
    %p84 = scmp.eq.s32.totalorder %s9, 0
    %p85 = por %p83, %p84
    %p86 = scmp.ne.s32.totalorder %s78, %s80
    %p87 = scmp.eq.s32.totalorder %s14, 2
    %p88 = por %p86, %p87
    %p89 = scmp.ne.s32.totalorder %s80, %s81
    %p90 = scmp.eq.s32.totalorder %s14, 0
    %p91 = por %p89, %p90
    %p92 = scmp.ne.s32.totalorder %s80, %s81
    %p93 = scmp.eq.s32.totalorder %s15, 2
    %p94 = por %p92, %p93
    %p96 = scmp.ne.s32.totalorder %s81, %s95
    %p97 = scmp.eq.s32.totalorder %s15, 0
    %p98 = por %p96, %p97
    %s99 = ssub.s32 %s16, %s28
    %s100 = ssub.s32 %s17, %s24
    %s101 = sor.u32 %s99, %s100
    %p102 = scmp.eq.s32.totalorder %s101, 0
    %s104 = sadd.s32 %s103, 1
    %s105 = scalar_select %p102, %s103, %s104
    %p108 = pneg %p102
    %p109 = scmp.eq.s32.totalorder %s9, 2
    %p110 = por %p108, %p109
    %p111 = scmp.ne.s32.totalorder %s103, %s106
    %p112 = scmp.eq.s32.totalorder %s9, 0
    %p113 = por %p111, %p112
    %p114 = scmp.ne.s32.totalorder %s103, %s106
    %p115 = scmp.eq.s32.totalorder %s14, 2
    %p116 = por %p114, %p115
    %p117 = scmp.ne.s32.totalorder %s106, %s107
    %p118 = scmp.eq.s32.totalorder %s14, 0
    %p119 = por %p117, %p118
    %p120 = scmp.ne.s32.totalorder %s106, %s107
    %p121 = scmp.eq.s32.totalorder %s15, 2
    %p122 = por %p120, %p121
    %p124 = scmp.ne.s32.totalorder %s107, %s123
    %p125 = scmp.eq.s32.totalorder %s15, 0
    %p126 = por %p124, %p125
    %p127 = scmp.le.s32.totalorder 1, %s9
    %p128 = scmp.lt.s32.totalorder %s9, 4
    %p129 = pnand %p127, %p128
    %p130 = pneg %p129
    // Predicated region
    $region9: #{tpu_custom_call.1} parent=5 // pred_check
      _
    $region10: #{tpu_custom_call.1} parent=5 // pred_check_branch
      %132 = sbr.rel (%p129) target = $region12
    $region11: #{tpu_custom_call.1} parent=5 // pred_region
      %s133 = ssub.s32 %s9, 1
      // Predicated region
      $region13: #{tpu_custom_call.1} parent=11 // pred_check
        %p134 = pneg %p70
      $region14: #{tpu_custom_call.1} parent=11 // pred_check_branch
        %136 = sbr.rel (%p134) target = $region16
      $region15: #{tpu_custom_call.1} parent=11 // pred_region
        _
      $region16: #{tpu_custom_call.1} parent=11 // pred_fallthru
        _
      // Predicated region
      $region17: #{tpu_custom_call.1} parent=11 // pred_check
        %p137 = pneg %p91
      $region18: #{tpu_custom_call.1} parent=11 // pred_check_branch
        %139 = sbr.rel (%p137) target = $region20
      $region19: #{tpu_custom_call.1} parent=11 // pred_region
        _
      $region20: #{tpu_custom_call.1} parent=11 // pred_fallthru
        _
    $region12: #{tpu_custom_call.1} parent=5 // pred_fallthru
      _
    %p140 = scmp.lt.s32.totalorder %s9, 3
    // Predicated region
    $region21: #{tpu_custom_call.1} parent=5 // pred_check
      %p141 = pneg %p140
    $region22: #{tpu_custom_call.1} parent=5 // pred_check_branch
      %143 = sbr.rel (%p141) target = $region24
    $region23: #{tpu_custom_call.1} parent=5 // pred_region
      // Predicated region
      $region25: #{tpu_custom_call.1} parent=23 // pred_check
        %p144 = pneg %p43
      $region26: #{tpu_custom_call.1} parent=23 // pred_check_branch
        %146 = sbr.rel (%p144) target = $region28
      $region27: #{tpu_custom_call.1} parent=23 // pred_region
        %p147 = scmp.lt.s32.totalorder %s16, 0
        %s148 = scalar_select %p147, %s16, 0
        %p149 = scmp.lt.s32.totalorder %s17, 2
        %s150 = scalar_select %p149, %s17, 2
        %s151 = smul.addr %s150, 12
        %s152 = smul.addr %s148, 36
        %s153 = sadd.s32 %s151, %s152
        %s154 = smul.addr %s153, 4
        %s155 = scalar_lea.vmem %s0, %s154
      $region28: #{tpu_custom_call.1} parent=23 // pred_fallthru
        _
    $region24: #{tpu_custom_call.1} parent=5 // pred_fallthru
      _
    %p156 = scmp.le.s32.totalorder 1, %s9
    %p157 = scmp.lt.s32.totalorder %s9, 4
    %p158 = pnand %p156, %p157
    %p159 = pneg %p158
    // Predicated region
    $region29: #{tpu_custom_call.1} parent=5 // pred_check
      _
    $region30: #{tpu_custom_call.1} parent=5 // pred_check_branch
      %161 = sbr.rel (%p158) target = $region32
    $region31: #{tpu_custom_call.1} parent=5 // pred_region
      %s162 = ssub.s32 %s9, 1
      %p163 = scmp.lt.s32.totalorder %s18, 0
      %s164 = scalar_select %p163, %s18, 0
      %p165 = scmp.lt.s32.totalorder %s19, 2
      %s166 = scalar_select %p165, %s19, 2
      %s167 = smul.addr %s166, 12
      %s168 = smul.addr %s164, 36
      %s169 = sadd.s32 %s167, %s168
      %s170 = smul.addr %s169, 4
      %s171 = scalar_lea.vmem %s0, %s170
      %p172 = pneg %p49
      %p173 = pneg %p46
      %p174 = pneg %p70
      %p175 = pneg %p67
      %p176 = pneg %p91
      %p177 = pneg %p88
      %p178 = pneg %p119
      %p179 = pneg %p116
      %p180 = scmp.lt.s32.totalorder %s18, 0
      %s181 = scalar_select %p180, %s18, 0
      %p182 = scmp.lt.s32.totalorder %s19, 2
      %s183 = scalar_select %p182, %s19, 2
      %s184 = smul.addr %s183, 8
      %s185 = smul.addr %s181, 24
      %s186 = sadd.s32 %s184, %s185
      %s187 = smul.addr %s186, 4
      %s188 = scalar_lea.vmem %s3, %s187
      %p189 = scmp.lt.s32.totalorder %s18, 0
      %s190 = scalar_select %p189, %s18, 0
      %p191 = scmp.lt.s32.totalorder %s19, 2
      %s192 = scalar_select %p191, %s19, 2
      %s193 = smul.addr %s192, 12
      %s194 = smul.addr %s190, 36
      %s195 = sadd.s32 %s193, %s194
      %s196 = smul.addr %s195, 4
      %s197 = scalar_lea.vmem %s0, %s196
      %p198 = scmp.lt.s32.totalorder %s18, 0
      %s199 = scalar_select %p198, %s18, 0
      %p200 = scmp.lt.s32.totalorder %s19, 2
      %s201 = scalar_select %p200, %s19, 2
      %s202 = smul.addr %s201, 8
      %s203 = smul.addr %s199, 24
      %s204 = sadd.s32 %s202, %s203
      %s205 = smul.addr %s204, 4
      %s206 = scalar_lea.vmem %s3, %s205
      loop: start=0, step=1, limit=4
      $region33: #{tpu_custom_call.1} parent=31 // loop_pre_header
        _
      $region34: #{tpu_custom_call.1} parent=31 // loop_header
        %s209 = sphi 0, %s213
        %p210 = scmp.ge.s32.totalorder %s209, 4
      $region35: #{tpu_custom_call.1} parent=31 // loop_header_branch
        %212 = sbr.rel (%p210) target = $region39
      $region36: #{tpu_custom_call.1} parent=31 // loop_body
        %s214 = smul.u32 %s209, 2
        %s215 = smul.addr %s214, 4
        %s216 = scalar_lea.vmem %s197, %s215
        %v217 = vld [vmem:[%s216] sm:$0xf]
        %v218 = vld [vmem:[%s216 + $0x4] sm:$0x3]
        %v219 = vld [vmem:[%s1] sm:$0xf]
        %v220 = vld [vmem:[%s216 + $0x4] sm:$0x7]
        %s221 = scalar_lea.vmem %s1, 4
        %v222 = vld [vmem:[%s221] sm:$0xf]
        %v225 = vunpack.c.l.b16 %v217
        %v226 = vunpack.c.l.b16 %v220
        %v227 = vpack.c.b16 %v226, %v225
        %v229 = vshrl.u32 %v227, 16
        %v231 = vshll.u32 %v227, 16
        %v233 = vrot.slane %v231, 1
        %v234 = vor.u32 %v229, %v233
        %vm235 = vcmask 64512
        %v237 = vsel %vm235, %v234, 0
        %vm239 = vcmask 1043456
        %v241 = vsel %vm239, %v222, 0
        %243 = vmatprep.subr.bf16.mxu0 0
        %244 = vmatpush1.bf16.msra.mxu0 %v241
        %245 = vmatprep.subr.bf16.mxu0 0
        %246 = vmatpush1.bf16.msra.mxu0 0
        %247 = vmatprep.subr.bf16.mxu0 0
        %248 = vmatpush1.bf16.msra.mxu0 0
        %249 = vmatprep.subr.bf16.mxu0 0
        %250 = vmatpush1.bf16.msra.mxu0 0
        %251 = vmatprep.subr.bf16.mxu0 0
        %252 = vmatpush1.bf16.msra.mxu0 0
        %253 = vmatprep.subr.bf16.mxu0 0
        %254 = vmatpush1.bf16.msra.mxu0 0
        %255 = vmatprep.subr.bf16.mxu0 0
        %256 = vmatpush1.bf16.msra.mxu0 0
        %257 = vmatprep.subr.bf16.mxu0 0
        %258 = vmatpush1.bf16.msra.mxu0 0
        %259 = vmatprep.subr.bf16.mxu0 0
        %260 = vmatpush1.bf16.msra.mxu0 0
        %261 = vmatprep.subr.bf16.mxu0 0
        %262 = vmatpush1.bf16.msra.mxu0 0
        %263 = vmatprep.subr.bf16.mxu0 0
        %264 = vmatpush1.bf16.msra.mxu0 0
        %265 = vmatprep.subr.bf16.mxu0 0
        %266 = vmatpush1.bf16.msra.mxu0 0
        %267 = vmatprep.subr.bf16.mxu0 0
        %268 = vmatpush1.bf16.msra.mxu0 0
        %269 = vmatprep.subr.bf16.mxu0 0
        %270 = vmatpush1.bf16.msra.mxu0 0
        %271 = vmatprep.subr.bf16.mxu0 0
        %272 = vmatpush1.bf16.msra.mxu0 0
        %273 = vmatprep.subr.bf16.mxu0 0
        %274 = vmatpush1.bf16.msra.mxu0 0
        %275 = vmatprep.mubr.bf16.mxu0 0
        %276 = vmatmul.mubr.bf16.gmra.mrb[0].mxu0 %v237
        %v277 = vpop.f32.mrb[0].mxu0
        %v278 = vadd.f32 0.0, %v277
        %v279 = vpop.f32.mrb[0].mxu0
        %v280 = vpop.f32.mrb[0].mxu0
        %v281 = vadd.f32 0.0, %v280
        %v282 = vpop.f32.mrb[0].mxu0
        %283 = vdwg.mxu0
        %v285 = vunpack.c.l.b16 %v218
        %v286 = vpack.c.b16 %v285, %v225
        %v288 = vsel %vm235, %v286, 0
        %v291 = vsel %vm239, %v219, 0
        %293 = vmatprep.subr.bf16.mxu0 0
        %294 = vmatpush1.bf16.msra.mxu0 %v291
        %295 = vmatprep.subr.bf16.mxu0 0
        %296 = vmatpush1.bf16.msra.mxu0 0
        %297 = vmatprep.subr.bf16.mxu0 0
        %298 = vmatpush1.bf16.msra.mxu0 0
        %299 = vmatprep.subr.bf16.mxu0 0
        %300 = vmatpush1.bf16.msra.mxu0 0
        %301 = vmatprep.subr.bf16.mxu0 0
        %302 = vmatpush1.bf16.msra.mxu0 0
        %303 = vmatprep.subr.bf16.mxu0 0
        %304 = vmatpush1.bf16.msra.mxu0 0
        %305 = vmatprep.subr.bf16.mxu0 0
        %306 = vmatpush1.bf16.msra.mxu0 0
        %307 = vmatprep.subr.bf16.mxu0 0
        %308 = vmatpush1.bf16.msra.mxu0 0
        %309 = vmatprep.subr.bf16.mxu0 0
        %310 = vmatpush1.bf16.msra.mxu0 0
        %311 = vmatprep.subr.bf16.mxu0 0
        %312 = vmatpush1.bf16.msra.mxu0 0
        %313 = vmatprep.subr.bf16.mxu0 0
        %314 = vmatpush1.bf16.msra.mxu0 0
        %315 = vmatprep.subr.bf16.mxu0 0
        %316 = vmatpush1.bf16.msra.mxu0 0
        %317 = vmatprep.subr.bf16.mxu0 0
        %318 = vmatpush1.bf16.msra.mxu0 0
        %319 = vmatprep.subr.bf16.mxu0 0
        %320 = vmatpush1.bf16.msra.mxu0 0
        %321 = vmatprep.subr.bf16.mxu0 0
        %322 = vmatpush1.bf16.msra.mxu0 0
        %323 = vmatprep.subr.bf16.mxu0 0
        %324 = vmatpush1.bf16.msra.mxu0 0
        %325 = vmatprep.mubr.bf16.mxu0 0
        %326 = vmatmul.mubr.bf16.gmra.mrb[0].mxu0 %v288
        %v327 = vpop.f32.mrb[0].mxu0
        %v328 = vadd.f32 %v278, %v327
        %v329 = vpop.f32.mrb[0].mxu0
        %v330 = vpop.f32.mrb[0].mxu0
        %v331 = vadd.f32 %v281, %v330
        %v332 = vpop.f32.mrb[0].mxu0
        %333 = vdwg.mxu0
        %v334 = vld [vmem:[%s216] sm:$0xe]
        %s335 = scalar_lea.vmem %s1, 8
        %v336 = vld [vmem:[%s335] sm:$0xf]
        %v338 = vunpack.c.l.b16 %v334
        %v339 = vpack.c.b16 %v226, %v338
        %v340 = vrot.slane %v339, 1
        %v342 = vsel %vm235, %v340, 0
        %v345 = vsel %vm239, %v336, 0
        %347 = vmatprep.subr.bf16.mxu0 0
        %348 = vmatpush1.bf16.msra.mxu0 %v345
        %349 = vmatprep.subr.bf16.mxu0 0
        %350 = vmatpush1.bf16.msra.mxu0 0
        %351 = vmatprep.subr.bf16.mxu0 0
        %352 = vmatpush1.bf16.msra.mxu0 0
        %353 = vmatprep.subr.bf16.mxu0 0
        %354 = vmatpush1.bf16.msra.mxu0 0
        %355 = vmatprep.subr.bf16.mxu0 0
        %356 = vmatpush1.bf16.msra.mxu0 0
        %357 = vmatprep.subr.bf16.mxu0 0
        %358 = vmatpush1.bf16.msra.mxu0 0
        %359 = vmatprep.subr.bf16.mxu0 0
        %360 = vmatpush1.bf16.msra.mxu0 0
        %361 = vmatprep.subr.bf16.mxu0 0
        %362 = vmatpush1.bf16.msra.mxu0 0
        %363 = vmatprep.subr.bf16.mxu0 0
        %364 = vmatpush1.bf16.msra.mxu0 0
        %365 = vmatprep.subr.bf16.mxu0 0
        %366 = vmatpush1.bf16.msra.mxu0 0
        %367 = vmatprep.subr.bf16.mxu0 0
        %368 = vmatpush1.bf16.msra.mxu0 0
        %369 = vmatprep.subr.bf16.mxu0 0
        %370 = vmatpush1.bf16.msra.mxu0 0
        %371 = vmatprep.subr.bf16.mxu0 0
        %372 = vmatpush1.bf16.msra.mxu0 0
        %373 = vmatprep.subr.bf16.mxu0 0
        %374 = vmatpush1.bf16.msra.mxu0 0
        %375 = vmatprep.subr.bf16.mxu0 0
        %376 = vmatpush1.bf16.msra.mxu0 0
        %377 = vmatprep.subr.bf16.mxu0 0
        %378 = vmatpush1.bf16.msra.mxu0 0
        %379 = vmatprep.mubr.bf16.mxu0 0
        %380 = vmatmul.mubr.bf16.gmra.mrb[0].mxu0 %v342
        %v381 = vpop.f32.mrb[0].mxu0
        %v382 = vadd.f32 0.0, %v381
        %v383 = vpop.f32.mrb[0].mxu0
        %v384 = vpop.f32.mrb[0].mxu0
        %v385 = vadd.f32 0.0, %v384
        %v386 = vpop.f32.mrb[0].mxu0
        %387 = vdwg.mxu0
        %v388 = vadd.f32 %v328, %v382
        %v389 = vadd.f32 %v331, %v385
        %s390 = sadd.s32 %s209, 1
        %s391 = smul.u32 %s390, 2
        %s392 = smul.addr %s391, 4
        %s393 = scalar_lea.vmem %s197, %s392
        %v394 = vld [vmem:[%s393] sm:$0xf]
        %v395 = vld [vmem:[%s393 + $0x4] sm:$0x3]
        %s396 = scalar_lea.vmem %s1, 12
        %v397 = vld [vmem:[%s396] sm:$0xf]
        %v400 = vunpack.c.l.b16 %v394
        %v401 = vunpack.c.l.b16 %v395
        %v402 = vpack.c.b16 %v401, %v400
        %v404 = vsel %vm235, %v402, 0
        %v407 = vsel %vm239, %v397, 0
        %409 = vmatprep.subr.bf16.mxu0 0
        %410 = vmatpush1.bf16.msra.mxu0 %v407
        %411 = vmatprep.subr.bf16.mxu0 0
        %412 = vmatpush1.bf16.msra.mxu0 0
        %413 = vmatprep.subr.bf16.mxu0 0
        %414 = vmatpush1.bf16.msra.mxu0 0
        %415 = vmatprep.subr.bf16.mxu0 0
        %416 = vmatpush1.bf16.msra.mxu0 0
        %417 = vmatprep.subr.bf16.mxu0 0
        %418 = vmatpush1.bf16.msra.mxu0 0
        %419 = vmatprep.subr.bf16.mxu0 0
        %420 = vmatpush1.bf16.msra.mxu0 0
        %421 = vmatprep.subr.bf16.mxu0 0
        %422 = vmatpush1.bf16.msra.mxu0 0
        %423 = vmatprep.subr.bf16.mxu0 0
        %424 = vmatpush1.bf16.msra.mxu0 0
        %425 = vmatprep.subr.bf16.mxu0 0
        %426 = vmatpush1.bf16.msra.mxu0 0
        %427 = vmatprep.subr.bf16.mxu0 0
        %428 = vmatpush1.bf16.msra.mxu0 0
        %429 = vmatprep.subr.bf16.mxu0 0
        %430 = vmatpush1.bf16.msra.mxu0 0
        %431 = vmatprep.subr.bf16.mxu0 0
        %432 = vmatpush1.bf16.msra.mxu0 0
        %433 = vmatprep.subr.bf16.mxu0 0
        %434 = vmatpush1.bf16.msra.mxu0 0
        %435 = vmatprep.subr.bf16.mxu0 0
        %436 = vmatpush1.bf16.msra.mxu0 0
        %437 = vmatprep.subr.bf16.mxu0 0
        %438 = vmatpush1.bf16.msra.mxu0 0
        %439 = vmatprep.subr.bf16.mxu0 0
        %440 = vmatpush1.bf16.msra.mxu0 0
        %441 = vmatprep.mubr.bf16.mxu0 0
        %442 = vmatmul.mubr.bf16.gmra.mrb[0].mxu0 %v404
        %v443 = vpop.f32.mrb[0].mxu0
        %v444 = vadd.f32 0.0, %v443
        %v445 = vpop.f32.mrb[0].mxu0
        %v446 = vpop.f32.mrb[0].mxu0
        %v447 = vadd.f32 0.0, %v446
        %v448 = vpop.f32.mrb[0].mxu0
        %449 = vdwg.mxu0
        %v450 = vadd.f32 %v388, %v444
        %v451 = vadd.f32 %v389, %v447
        %v452 = vld [vmem:[%s393 + $0x4] sm:$0x7]
        %s453 = scalar_lea.vmem %s1, 16
        %v454 = vld [vmem:[%s453] sm:$0xf]
        %v456 = vunpack.c.l.b16 %v452
        %v457 = vpack.c.b16 %v456, %v400
        %v459 = vshrl.u32 %v457, 16
        %v461 = vshll.u32 %v457, 16
        %v463 = vrot.slane %v461, 1
        %v464 = vor.u32 %v459, %v463
        %v466 = vsel %vm235, %v464, 0
        %v469 = vsel %vm239, %v454, 0
        %471 = vmatprep.subr.bf16.mxu0 0
        %472 = vmatpush1.bf16.msra.mxu0 %v469
        %473 = vmatprep.subr.bf16.mxu0 0
        %474 = vmatpush1.bf16.msra.mxu0 0
        %475 = vmatprep.subr.bf16.mxu0 0
        %476 = vmatpush1.bf16.msra.mxu0 0
        %477 = vmatprep.subr.bf16.mxu0 0
        %478 = vmatpush1.bf16.msra.mxu0 0
        %479 = vmatprep.subr.bf16.mxu0 0
        %480 = vmatpush1.bf16.msra.mxu0 0
        %481 = vmatprep.subr.bf16.mxu0 0
        %482 = vmatpush1.bf16.msra.mxu0 0
        %483 = vmatprep.subr.bf16.mxu0 0
        %484 = vmatpush1.bf16.msra.mxu0 0
        %485 = vmatprep.subr.bf16.mxu0 0
        %486 = vmatpush1.bf16.msra.mxu0 0
        %487 = vmatprep.subr.bf16.mxu0 0
        %488 = vmatpush1.bf16.msra.mxu0 0
        %489 = vmatprep.subr.bf16.mxu0 0
        %490 = vmatpush1.bf16.msra.mxu0 0
        %491 = vmatprep.subr.bf16.mxu0 0
        %492 = vmatpush1.bf16.msra.mxu0 0
        %493 = vmatprep.subr.bf16.mxu0 0
        %494 = vmatpush1.bf16.msra.mxu0 0
        %495 = vmatprep.subr.bf16.mxu0 0
        %496 = vmatpush1.bf16.msra.mxu0 0
        %497 = vmatprep.subr.bf16.mxu0 0
        %498 = vmatpush1.bf16.msra.mxu0 0
        %499 = vmatprep.subr.bf16.mxu0 0
        %500 = vmatpush1.bf16.msra.mxu0 0
        %501 = vmatprep.subr.bf16.mxu0 0
        %502 = vmatpush1.bf16.msra.mxu0 0
        %503 = vmatprep.mubr.bf16.mxu0 0
        %504 = vmatmul.mubr.bf16.gmra.mrb[0].mxu0 %v466
        %v505 = vpop.f32.mrb[0].mxu0
        %v506 = vadd.f32 0.0, %v505
        %v507 = vpop.f32.mrb[0].mxu0
        %v508 = vpop.f32.mrb[0].mxu0
        %v509 = vadd.f32 0.0, %v508
        %v510 = vpop.f32.mrb[0].mxu0
        %511 = vdwg.mxu0
        %v512 = vadd.f32 %v450, %v506
        %v513 = vadd.f32 %v451, %v509
        %v514 = vld [vmem:[%s393] sm:$0xe]
        %s515 = scalar_lea.vmem %s1, 20
        %v516 = vld [vmem:[%s515] sm:$0xf]
        %v518 = vunpack.c.l.b16 %v514
        %v519 = vpack.c.b16 %v456, %v518
        %v520 = vrot.slane %v519, 1
        %v522 = vsel %vm235, %v520, 0
        %v525 = vsel %vm239, %v516, 0
        %527 = vmatprep.subr.bf16.mxu0 0
        %528 = vmatpush1.bf16.msra.mxu0 %v525
        %529 = vmatprep.subr.bf16.mxu0 0
        %530 = vmatpush1.bf16.msra.mxu0 0
        %531 = vmatprep.subr.bf16.mxu0 0
        %532 = vmatpush1.bf16.msra.mxu0 0
        %533 = vmatprep.subr.bf16.mxu0 0
        %534 = vmatpush1.bf16.msra.mxu0 0
        %535 = vmatprep.subr.bf16.mxu0 0
        %536 = vmatpush1.bf16.msra.mxu0 0
        %537 = vmatprep.subr.bf16.mxu0 0
        %538 = vmatpush1.bf16.msra.mxu0 0
        %539 = vmatprep.subr.bf16.mxu0 0
        %540 = vmatpush1.bf16.msra.mxu0 0
        %541 = vmatprep.subr.bf16.mxu0 0
        %542 = vmatpush1.bf16.msra.mxu0 0
        %543 = vmatprep.subr.bf16.mxu0 0
        %544 = vmatpush1.bf16.msra.mxu0 0
        %545 = vmatprep.subr.bf16.mxu0 0
        %546 = vmatpush1.bf16.msra.mxu0 0
        %547 = vmatprep.subr.bf16.mxu0 0
        %548 = vmatpush1.bf16.msra.mxu0 0
        %549 = vmatprep.subr.bf16.mxu0 0
        %550 = vmatpush1.bf16.msra.mxu0 0
        %551 = vmatprep.subr.bf16.mxu0 0
        %552 = vmatpush1.bf16.msra.mxu0 0
        %553 = vmatprep.subr.bf16.mxu0 0
        %554 = vmatpush1.bf16.msra.mxu0 0
        %555 = vmatprep.subr.bf16.mxu0 0
        %556 = vmatpush1.bf16.msra.mxu0 0
        %557 = vmatprep.subr.bf16.mxu0 0
        %558 = vmatpush1.bf16.msra.mxu0 0
        %559 = vmatprep.mubr.bf16.mxu0 0
        %560 = vmatmul.mubr.bf16.gmra.mrb[0].mxu0 %v522
        %v561 = vpop.f32.mrb[0].mxu0
        %v562 = vadd.f32 0.0, %v561
        %v563 = vpop.f32.mrb[0].mxu0
        %v564 = vpop.f32.mrb[0].mxu0
        %v565 = vadd.f32 0.0, %v564
        %v566 = vpop.f32.mrb[0].mxu0
        %567 = vdwg.mxu0
        %v568 = vadd.f32 %v512, %v562
        %v569 = vadd.f32 %v513, %v565
        %s570 = sadd.s32 %s209, 2
        %s571 = smul.u32 %s570, 2
        %s572 = smul.addr %s571, 4
        %s573 = scalar_lea.vmem %s197, %s572
        %v574 = vld [vmem:[%s573] sm:$0xf]
        %v575 = vld [vmem:[%s573 + $0x4] sm:$0x3]
        %s576 = scalar_lea.vmem %s1, 24
        %v577 = vld [vmem:[%s576] sm:$0xf]
        %v580 = vunpack.c.l.b16 %v574
        %v581 = vunpack.c.l.b16 %v575
        %v582 = vpack.c.b16 %v581, %v580
        %v584 = vsel %vm235, %v582, 0
        %v587 = vsel %vm239, %v577, 0
        %589 = vmatprep.subr.bf16.mxu0 0
        %590 = vmatpush1.bf16.msra.mxu0 %v587
        %591 = vmatprep.subr.bf16.mxu0 0
        %592 = vmatpush1.bf16.msra.mxu0 0
        %593 = vmatprep.subr.bf16.mxu0 0
        %594 = vmatpush1.bf16.msra.mxu0 0
        %595 = vmatprep.subr.bf16.mxu0 0
        %596 = vmatpush1.bf16.msra.mxu0 0
        %597 = vmatprep.subr.bf16.mxu0 0
        %598 = vmatpush1.bf16.msra.mxu0 0
        %599 = vmatprep.subr.bf16.mxu0 0
        %600 = vmatpush1.bf16.msra.mxu0 0
        %601 = vmatprep.subr.bf16.mxu0 0
        %602 = vmatpush1.bf16.msra.mxu0 0
        %603 = vmatprep.subr.bf16.mxu0 0
        %604 = vmatpush1.bf16.msra.mxu0 0
        %605 = vmatprep.subr.bf16.mxu0 0
        %606 = vmatpush1.bf16.msra.mxu0 0
        %607 = vmatprep.subr.bf16.mxu0 0
        %608 = vmatpush1.bf16.msra.mxu0 0
        %609 = vmatprep.subr.bf16.mxu0 0
        %610 = vmatpush1.bf16.msra.mxu0 0
        %611 = vmatprep.subr.bf16.mxu0 0
        %612 = vmatpush1.bf16.msra.mxu0 0
        %613 = vmatprep.subr.bf16.mxu0 0
        %614 = vmatpush1.bf16.msra.mxu0 0
        %615 = vmatprep.subr.bf16.mxu0 0
        %616 = vmatpush1.bf16.msra.mxu0 0
        %617 = vmatprep.subr.bf16.mxu0 0
        %618 = vmatpush1.bf16.msra.mxu0 0
        %619 = vmatprep.subr.bf16.mxu0 0
        %620 = vmatpush1.bf16.msra.mxu0 0
        %621 = vmatprep.mubr.bf16.mxu0 0
        %622 = vmatmul.mubr.bf16.gmra.mrb[0].mxu0 %v584
        %v623 = vpop.f32.mrb[0].mxu0
        %v624 = vadd.f32 0.0, %v623
        %v625 = vpop.f32.mrb[0].mxu0
        %v626 = vpop.f32.mrb[0].mxu0
        %v627 = vadd.f32 0.0, %v626
        %v628 = vpop.f32.mrb[0].mxu0
        %629 = vdwg.mxu0
        %v630 = vadd.f32 %v568, %v624
        %v631 = vadd.f32 %v569, %v627
        %v632 = vld [vmem:[%s573 + $0x4] sm:$0x7]
        %s633 = scalar_lea.vmem %s1, 28
        %v634 = vld [vmem:[%s633] sm:$0xf]
        %v636 = vunpack.c.l.b16 %v632
        %v637 = vpack.c.b16 %v636, %v580
        %v639 = vshrl.u32 %v637, 16
        %v641 = vshll.u32 %v637, 16
        %v643 = vrot.slane %v641, 1
        %v644 = vor.u32 %v639, %v643
        %v646 = vsel %vm235, %v644, 0
        %v649 = vsel %vm239, %v634, 0
        %651 = vmatprep.subr.bf16.mxu0 0
        %652 = vmatpush1.bf16.msra.mxu0 %v649
        %653 = vmatprep.subr.bf16.mxu0 0
        %654 = vmatpush1.bf16.msra.mxu0 0
        %655 = vmatprep.subr.bf16.mxu0 0
        %656 = vmatpush1.bf16.msra.mxu0 0
        %657 = vmatprep.subr.bf16.mxu0 0
        %658 = vmatpush1.bf16.msra.mxu0 0
        %659 = vmatprep.subr.bf16.mxu0 0
        %660 = vmatpush1.bf16.msra.mxu0 0
        %661 = vmatprep.subr.bf16.mxu0 0
        %662 = vmatpush1.bf16.msra.mxu0 0
        %663 = vmatprep.subr.bf16.mxu0 0
        %664 = vmatpush1.bf16.msra.mxu0 0
        %665 = vmatprep.subr.bf16.mxu0 0
        %666 = vmatpush1.bf16.msra.mxu0 0
        %667 = vmatprep.subr.bf16.mxu0 0
        %668 = vmatpush1.bf16.msra.mxu0 0
        %669 = vmatprep.subr.bf16.mxu0 0
        %670 = vmatpush1.bf16.msra.mxu0 0
        %671 = vmatprep.subr.bf16.mxu0 0
        %672 = vmatpush1.bf16.msra.mxu0 0
        %673 = vmatprep.subr.bf16.mxu0 0
        %674 = vmatpush1.bf16.msra.mxu0 0
        %675 = vmatprep.subr.bf16.mxu0 0
        %676 = vmatpush1.bf16.msra.mxu0 0
        %677 = vmatprep.subr.bf16.mxu0 0
        %678 = vmatpush1.bf16.msra.mxu0 0
        %679 = vmatprep.subr.bf16.mxu0 0
        %680 = vmatpush1.bf16.msra.mxu0 0
        %681 = vmatprep.subr.bf16.mxu0 0
        %682 = vmatpush1.bf16.msra.mxu0 0
        %683 = vmatprep.mubr.bf16.mxu0 0
        %684 = vmatmul.mubr.bf16.gmra.mrb[0].mxu0 %v646
        %v685 = vpop.f32.mrb[0].mxu0
        %v686 = vadd.f32 0.0, %v685
        %v687 = vpop.f32.mrb[0].mxu0
        %v688 = vpop.f32.mrb[0].mxu0
        %v689 = vadd.f32 0.0, %v688
        %v690 = vpop.f32.mrb[0].mxu0
        %691 = vdwg.mxu0
        %v692 = vadd.f32 %v630, %v686
        %v693 = vadd.f32 %v631, %v689
        %v694 = vld [vmem:[%s573] sm:$0xe]
        %s695 = scalar_lea.vmem %s1, 32
        %v696 = vld [vmem:[%s695] sm:$0xf]
        %v698 = vunpack.c.l.b16 %v694
        %v699 = vpack.c.b16 %v636, %v698
        %v700 = vrot.slane %v699, 1
        %v702 = vsel %vm235, %v700, 0
        %v705 = vsel %vm239, %v696, 0
        %707 = vmatprep.subr.bf16.mxu0 0
        %708 = vmatpush1.bf16.msra.mxu0 %v705
        %709 = vmatprep.subr.bf16.mxu0 0
        %710 = vmatpush1.bf16.msra.mxu0 0
        %711 = vmatprep.subr.bf16.mxu0 0
        %712 = vmatpush1.bf16.msra.mxu0 0
        %713 = vmatprep.subr.bf16.mxu0 0
        %714 = vmatpush1.bf16.msra.mxu0 0
        %715 = vmatprep.subr.bf16.mxu0 0
        %716 = vmatpush1.bf16.msra.mxu0 0
        %717 = vmatprep.subr.bf16.mxu0 0
        %718 = vmatpush1.bf16.msra.mxu0 0
        %719 = vmatprep.subr.bf16.mxu0 0
        %720 = vmatpush1.bf16.msra.mxu0 0
        %721 = vmatprep.subr.bf16.mxu0 0
        %722 = vmatpush1.bf16.msra.mxu0 0
        %723 = vmatprep.subr.bf16.mxu0 0
        %724 = vmatpush1.bf16.msra.mxu0 0
        %725 = vmatprep.subr.bf16.mxu0 0
        %726 = vmatpush1.bf16.msra.mxu0 0
        %727 = vmatprep.subr.bf16.mxu0 0
        %728 = vmatpush1.bf16.msra.mxu0 0
        %729 = vmatprep.subr.bf16.mxu0 0
        %730 = vmatpush1.bf16.msra.mxu0 0
        %731 = vmatprep.subr.bf16.mxu0 0
        %732 = vmatpush1.bf16.msra.mxu0 0
        %733 = vmatprep.subr.bf16.mxu0 0
        %734 = vmatpush1.bf16.msra.mxu0 0
        %735 = vmatprep.subr.bf16.mxu0 0
        %736 = vmatpush1.bf16.msra.mxu0 0
        %737 = vmatprep.subr.bf16.mxu0 0
        %738 = vmatpush1.bf16.msra.mxu0 0
        %739 = vmatprep.mubr.bf16.mxu0 0
        %740 = vmatmul.mubr.bf16.gmra.mrb[0].mxu0 %v702
        %v741 = vpop.f32.mrb[0].mxu0
        %v742 = vadd.f32 0.0, %v741
        %v743 = vpop.f32.mrb[0].mxu0
        %v744 = vpop.f32.mrb[0].mxu0
        %v745 = vadd.f32 0.0, %v744
        %v746 = vpop.f32.mrb[0].mxu0
        %747 = vdwg.mxu0
        %v748 = vadd.f32 %v692, %v742
        %v749 = vadd.f32 %v693, %v745
        %v750 = vld [vmem:[%s2] sm:$0x1]
        %v752 = vlaneseq
        %v753 = vshrl.u32 %v752, 7
        %v754 = vsub.s32 0, %v753
        %v755 = vrot.slane %v750, %v754
        %v757 = vadd.f32 %v748, %v755
        %v758 = vadd.f32 %v749, %v755
        %v759 = vpack.c.bf16 %v758, %v757
        %v761 = vunpack.c.l.b16 %v759
        %v762 = vunpack.c.h.b16 %v759
        %v763 = vpack.c.b16 %v761, %v761
        %v764 = vpack.c.b16 %v762, %v762
        %s767 = smul.addr %s214, 4
        %s768 = scalar_lea.vmem %s206, %s767
        %vm769 = vcmask 125952
        %770 = vst.msk [vmem:[%s768] sm:$0xf] %vm769, %v763
        %vm771 = vcmask 123904
        %772 = vst.msk [vmem:[%s768 + $0x4] sm:$0x3] %vm771, %v764
      $region37: #{tpu_custom_call.1} parent=31 // loop_footer
        %s213 = sadd.s32 1, %s209
      $region38: #{tpu_custom_call.1} parent=31 // loop_footer_branch
        %208 = sbr.rel target = $region34
      $region39: #{tpu_custom_call.1} parent=31 // loop_exit
        _
      %p773 = scmp.lt.s32.totalorder %s18, 0
      %s774 = scalar_select %p773, %s18, 0
      %p775 = scmp.lt.s32.totalorder %s19, 2
      %s776 = scalar_select %p775, %s19, 2
      %s777 = smul.addr %s776, 8
      %s778 = smul.addr %s774, 24
      %s779 = sadd.s32 %s777, %s778
      %s780 = smul.addr %s779, 4
      %s781 = scalar_lea.vmem %s3, %s780
      // Predicated region
      $region40: #{tpu_custom_call.1} parent=31 // pred_check
        %p782 = pneg %p116
      $region41: #{tpu_custom_call.1} parent=31 // pred_check_branch
        %784 = sbr.rel (%p782) target = $region43
      $region42: #{tpu_custom_call.1} parent=31 // pred_region
        _
      $region43: #{tpu_custom_call.1} parent=31 // pred_fallthru
        _
    $region32: #{tpu_custom_call.1} parent=5 // pred_fallthru
      _
    %p785 = scmp.le.s32.totalorder 2, %s9
    // Predicated region
    $region44: #{tpu_custom_call.1} parent=5 // pred_check
      %p786 = pneg %p785
    $region45: #{tpu_custom_call.1} parent=5 // pred_check_branch
      %788 = sbr.rel (%p786) target = $region47
    $region46: #{tpu_custom_call.1} parent=5 // pred_region
      %s789 = ssub.s32 %s9, 2
      // Predicated region
      $region48: #{tpu_custom_call.1} parent=46 // pred_check
        %p790 = pneg %p122
      $region49: #{tpu_custom_call.1} parent=46 // pred_check_branch
        %792 = sbr.rel (%p790) target = $region51
      $region50: #{tpu_custom_call.1} parent=46 // pred_region
        %p793 = scmp.lt.s32.totalorder %s20, 0
        %s794 = scalar_select %p793, %s20, 0
        %p795 = scmp.lt.s32.totalorder %s21, 2
        %s796 = scalar_select %p795, %s21, 2
        %s797 = smul.addr %s796, 8
        %s798 = smul.addr %s794, 24
        %s799 = sadd.s32 %s797, %s798
        %s800 = smul.addr %s799, 4
        %s801 = scalar_lea.vmem %s3, %s800
      $region51: #{tpu_custom_call.1} parent=46 // pred_fallthru
        _
    $region47: #{tpu_custom_call.1} parent=5 // pred_fallthru
      _
  $region6: #{tpu_custom_call.1} parent=0 // loop_footer
    %s13 = sadd.s32 1, %s9
  $region7: #{tpu_custom_call.1} parent=0 // loop_footer_branch
    %8 = sbr.rel target = $region3
  $region8: #{tpu_custom_call.1} parent=0 // loop_exit
    _

</llo_original>
